<compile_context>
chip_gen: v7x
topology: tpu7x:2x2x1
jax: 0.10.0
libtpu: 0.0.40
codegen_flags: <defaults>
</compile_context>

<pallas_src>
import functools

import jax
import jax.numpy as jnp
from jax.experimental import pallas as pl
from jax.experimental.pallas import tpu as pltpu


def _intra_loss_kernel(img_ref, txt_ref, out_ref, g_acc, ssi_acc, sst_acc,
                       *, up, down, lamb, b):
    k = pl.program_id(0)
    nk = pl.num_programs(0)

    @pl.when(k == 0)
    def _init():
        g_acc[...] = jnp.zeros_like(g_acc)
        ssi_acc[...] = jnp.zeros_like(ssi_acc)
        sst_acc[...] = jnp.zeros_like(sst_acc)

    img = img_ref[...]  # (B, tk), native dtype (bf16 friendly)
    txt = txt_ref[...]  # (B, tk), native dtype

    # Partial raw Gram: G += img @ txt.T.  Contract on the last dims so no
    # transpose/relayout is needed; f32 accumulation on the MXU.
    g_acc[...] += jax.lax.dot_general(
        img, txt, (((1,), (1,)), ((), ())),
        preferred_element_type=jnp.float32)

    # Partial row square-sums for the deferred normalization (f32).
    img_f = img.astype(jnp.float32)
    txt_f = txt.astype(jnp.float32)
    ssi_acc[...] += jnp.sum(img_f * img_f, axis=1, keepdims=True)  # (B, 1)
    sst_acc[...] += jnp.sum(txt_f * txt_f, axis=1, keepdims=True)  # (B, 1)

    @pl.when(k == nk - 1)
    def _epilogue():
        # Deferred normalization: mx = diag(inv_i) @ G @ diag(inv_t).
        # Matches torch: x / (x.norm(dim=1, keepdim=True) + 1e-8).
        inv_i = 1.0 / (jnp.sqrt(ssi_acc[...]) + 1e-8)  # (B, 1)
        inv_t = 1.0 / (jnp.sqrt(sst_acc[...]) + 1e-8)  # (B, 1)

        row = jax.lax.broadcasted_iota(jnp.int32, (b, b), 0)
        col = jax.lax.broadcasted_iota(jnp.int32, (b, b), 1)
        eye_mask = row == col

        # diag(inv_t) built from a cheap column broadcast; the tiny (B,B,B)
        # matmul column-scales G on the otherwise-idle MXU (no relayout).
        d_t = jnp.where(eye_mask, inv_t, 0.0)                       # (B, B)
        mx = jax.lax.dot_general(
            g_acc[...] * inv_i, d_t, (((1,), (0,)), ((), ())),
            preferred_element_type=jnp.float32)                     # (B, B)

        # scores = cosine_sim(mx, mx) == mx @ mx.T (no transpose needed).
        scores = jax.lax.dot_general(
            mx, mx, (((1,), (1,)), ((), ())),
            preferred_element_type=jnp.float32)                     # (B, B)

        # (scores - I), then keep only entries strictly inside (up, 1 - down).
        s = jnp.where(eye_mask, scores - 1.0, scores)
        s = jnp.where((s > up) & (s < (1.0 - down)), s, 0.0)

        # Staged reduction: lane axis first, then the small sublane reduce.
        row_sum = jnp.sum(s, axis=-1, keepdims=True)                # (B, 1)
        out_ref[0, 0] = lamb * jnp.sum(row_sum) / jnp.float32(b)


def intra_loss(img_emb, text_emb, *, up=0.2, down=0.04, lamb=1.0, tk=512):
    """IntraLoss(measure='cosine') forward. Returns a scalar float32."""
    b = img_emb.shape[0]
    img = img_emb.reshape(b, -1)
    txt = text_emb.reshape(b, -1)
    d = img.shape[1]
    assert txt.shape[1] == d, "image/text flattened feature dims must match"

    if d <= tk:
        # Single K block: a full-extent block sidesteps the (8,128) constraint.
        tk_eff, nk = d, 1
    else:
        # Lane-aligned K tiles; zero-pad D (padding changes neither G nor the
        # square-sums).
        tk_eff = tk
        nk = pl.cdiv(d, tk_eff)
        d_pad = nk * tk_eff
        if d_pad != d:
            img = jnp.pad(img, ((0, 0), (0, d_pad - d)))
            txt = jnp.pad(txt, ((0, 0), (0, d_pad - d)))

    # VMEM budget: 2 inputs x double-buffered (B, tk) tiles + (B,B)+2(B,1) f32
    # accumulators, plus slack.  Clamp below v7x's 64 MiB per-core VMEM.
    itemsize = jnp.dtype(img.dtype).itemsize
    vmem_bytes = 2 * 2 * b * tk_eff * itemsize + 4 * b * (b + 2) + (2 << 20)
    vmem_bytes = int(min(max(vmem_bytes, 8 << 20), 48 << 20))

    kernel = functools.partial(
        _intra_loss_kernel, up=up, down=down, lamb=lamb, b=b)

    out = pl.pallas_call(
        kernel,
        out_shape=jax.ShapeDtypeStruct((1, 1), jnp.float32),
        grid_spec=pltpu.PrefetchScalarGridSpec(
            num_scalar_prefetch=0,
            grid=(nk,),
            in_specs=[
                pl.BlockSpec((b, tk_eff), lambda k: (0, k)),
                pl.BlockSpec((b, tk_eff), lambda k: (0, k)),
            ],
            out_specs=pl.BlockSpec(memory_space=pltpu.MemorySpace.SMEM),
            scratch_shapes=[
                pltpu.VMEM((b, b), jnp.float32),   # G accumulator
                pltpu.VMEM((b, 1), jnp.float32),   # img square-sums
                pltpu.VMEM((b, 1), jnp.float32),   # txt square-sums
            ],
        ),
        compiler_params=pltpu.CompilerParams(
            dimension_semantics=("arbitrary",),
            vmem_limit_bytes=vmem_bytes,
        ),
    )(img, txt)
    return out[0, 0]


def _reference(img_emb, text_emb, *, up=0.2, down=0.04, lamb=1.0):
    """Pure-JAX port of the PyTorch forward (measure='cosine')."""
    b = img_emb.shape[0]
    img = img_emb.reshape(b, -1).astype(jnp.float32)
    txt = text_emb.reshape(b, -1).astype(jnp.float32)
    img_n = img / (jnp.linalg.norm(img, axis=1, keepdims=True) + 1e-8)
    txt_n = txt / (jnp.linalg.norm(txt, axis=1, keepdims=True) + 1e-8)
    mx = img_n @ txt_n.T
    scores = mx @ mx.T
    s = scores - jnp.eye(b, dtype=jnp.float32)
    s = s * (s > up).astype(jnp.float32)
    s = s * (s < (1.0 - down)).astype(jnp.float32)
    return lamb * jnp.sum(s) / b


if __name__ == "__main__":
    key = jax.random.PRNGKey(0)
    k1, k2, k3, k4 = jax.random.split(key, 4)

    # Small case: single K block (D fits in one tile).
    B, D = 8, 32
    img_emb = jax.random.normal(k1, (B, D), dtype=jnp.float32)
    text_emb = jax.random.normal(k2, (B, D), dtype=jnp.float32)
    loss = intra_loss(img_emb, text_emb)
    jax.block_until_ready(loss)
    ref = _reference(img_emb, text_emb)
    assert jnp.allclose(loss, ref, atol=1e-5, rtol=1e-5), (loss, ref)

    # Tiled case: exercises the K-grid accumulator path (nk = 3).
    B2, D2 = 8, 384
    img2 = jax.random.normal(k3, (B2, D2), dtype=jnp.float32)
    txt2 = jax.random.normal(k4, (B2, D2), dtype=jnp.float32)
    loss2 = intra_loss(img2, txt2, tk=128)
    jax.block_until_ready(loss2)
    ref2 = _reference(img2, txt2)
    assert jnp.allclose(loss2, ref2, atol=1e-5, rtol=1e-5), (loss2, ref2)

    print("KERNEL_OK")
</pallas_src>

<mosaic_0001>
module attributes {stable_mosaic.version = 11 : i64} {
  func.func @_intra_loss_kernel(%arg0: i32, %arg1: memref<8x32xf32, #tpu.memory_space<vmem>>, %arg2: memref<8x32xf32, #tpu.memory_space<vmem>>, %arg3: memref<1x1xf32, #tpu.memory_space<smem>>, %arg4: memref<8x8xf32, #tpu.memory_space<vmem>>, %arg5: memref<8x1xf32, #tpu.memory_space<vmem>>, %arg6: memref<8x1xf32, #tpu.memory_space<vmem>>) attributes {dimension_semantics = [#tpu.dimension_semantics<arbitrary>], iteration_bounds = array<i64: 1>, scalar_prefetch = 0 : i64, scratch_operands = 3 : i64, tpu.core_type = #tpu.core_type<tc>, window_params = [{transform_indices = @transform_0, window_bounds = array<i64: 8, 32>}, {transform_indices = @transform_1, window_bounds = array<i64: 8, 32>}, {transform_indices = @transform_2, window_bounds = array<i64: 1, 1>}]} {
    %c0_i32 = arith.constant 0 : i32
    %0 = arith.cmpi eq, %arg0, %c0_i32 : i32
    %1 = arith.extui %0 : i1 to i32
    %c0_i32_0 = arith.constant 0 : i32
    %2 = arith.cmpi ne, %1, %c0_i32_0 : i32
    scf.if %2 {
      %cst_20 = arith.constant 0.000000e+00 : f32
      %24 = vector.broadcast %cst_20 : f32 to vector<8x8xf32>
      %c0_21 = arith.constant 0 : index
      %c0_22 = arith.constant 0 : index
      %25 = vector.load %arg4[%c0_21, %c0_22] : memref<8x8xf32, #tpu.memory_space<vmem>>, vector<8x8xf32>
      tpu.vector_store %arg4[%c0_21, %c0_22], %24 {strides = array<i32>} : memref<8x8xf32, #tpu.memory_space<vmem>>, vector<8x8xf32>,
      %cst_23 = arith.constant 0.000000e+00 : f32
      %26 = vector.broadcast %cst_23 : f32 to vector<8x1xf32>
      %c0_24 = arith.constant 0 : index
      %c0_25 = arith.constant 0 : index
      %27 = vector.load %arg5[%c0_24, %c0_25] : memref<8x1xf32, #tpu.memory_space<vmem>>, vector<8x1xf32>
      tpu.vector_store %arg5[%c0_24, %c0_25], %26 {strides = array<i32>} : memref<8x1xf32, #tpu.memory_space<vmem>>, vector<8x1xf32>,
      %cst_26 = arith.constant 0.000000e+00 : f32
      %28 = vector.broadcast %cst_26 : f32 to vector<8x1xf32>
      %c0_27 = arith.constant 0 : index
      %c0_28 = arith.constant 0 : index
      %29 = vector.load %arg6[%c0_27, %c0_28] : memref<8x1xf32, #tpu.memory_space<vmem>>, vector<8x1xf32>
      tpu.vector_store %arg6[%c0_27, %c0_28], %28 {strides = array<i32>} : memref<8x1xf32, #tpu.memory_space<vmem>>, vector<8x1xf32>,
    } else {
    }
    %c0 = arith.constant 0 : index
    %c0_1 = arith.constant 0 : index
    %3 = vector.load %arg1[%c0, %c0_1] : memref<8x32xf32, #tpu.memory_space<vmem>>, vector<8x32xf32>
    %c0_2 = arith.constant 0 : index
    %c0_3 = arith.constant 0 : index
    %4 = vector.load %arg2[%c0_2, %c0_3] : memref<8x32xf32, #tpu.memory_space<vmem>>, vector<8x32xf32>
    %c0_4 = arith.constant 0 : index
    %c0_5 = arith.constant 0 : index
    %5 = vector.load %arg4[%c0_4, %c0_5] : memref<8x8xf32, #tpu.memory_space<vmem>>, vector<8x8xf32>
    %cst = arith.constant dense<0.000000e+00> : vector<8x8xf32>
    %6 = tpu.matmul %3, %4, %cst {dimension_numbers = #tpu.dot_dimension_numbers<[1], [1], [0], [0], [0, 0, 1, 0], [], []>} : vector<8x32xf32>, vector<8x32xf32>, vector<8x8xf32> -> vector<8x8xf32>
    %7 = arith.addf %5, %6 : vector<8x8xf32>
    %c0_6 = arith.constant 0 : index
    %c0_7 = arith.constant 0 : index
    %8 = vector.load %arg4[%c0_6, %c0_7] : memref<8x8xf32, #tpu.memory_space<vmem>>, vector<8x8xf32>
    tpu.vector_store %arg4[%c0_6, %c0_7], %7 {strides = array<i32>} : memref<8x8xf32, #tpu.memory_space<vmem>>, vector<8x8xf32>,
    %c0_8 = arith.constant 0 : index
    %c0_9 = arith.constant 0 : index
    %9 = vector.load %arg5[%c0_8, %c0_9] : memref<8x1xf32, #tpu.memory_space<vmem>>, vector<8x1xf32>
    %10 = arith.mulf %3, %3 : vector<8x32xf32>
    %cst_10 = arith.constant dense<0.000000e+00> : vector<8xf32>
    %11 = vector.multi_reduction <add>, %10, %cst_10 [1] : vector<8x32xf32> to vector<8xf32>
    %12 = vector.shape_cast %11 : vector<8xf32> to vector<8x1xf32>
    %13 = arith.addf %9, %12 : vector<8x1xf32>
    %c0_11 = arith.constant 0 : index
    %c0_12 = arith.constant 0 : index
    %14 = vector.load %arg5[%c0_11, %c0_12] : memref<8x1xf32, #tpu.memory_space<vmem>>, vector<8x1xf32>
    tpu.vector_store %arg5[%c0_11, %c0_12], %13 {strides = array<i32>} : memref<8x1xf32, #tpu.memory_space<vmem>>, vector<8x1xf32>,
    %c0_13 = arith.constant 0 : index
    %c0_14 = arith.constant 0 : index
    %15 = vector.load %arg6[%c0_13, %c0_14] : memref<8x1xf32, #tpu.memory_space<vmem>>, vector<8x1xf32>
    %16 = arith.mulf %4, %4 : vector<8x32xf32>
    %cst_15 = arith.constant dense<0.000000e+00> : vector<8xf32>
    %17 = vector.multi_reduction <add>, %16, %cst_15 [1] : vector<8x32xf32> to vector<8xf32>
    %18 = vector.shape_cast %17 : vector<8xf32> to vector<8x1xf32>
    %19 = arith.addf %15, %18 : vector<8x1xf32>
    %c0_16 = arith.constant 0 : index
    %c0_17 = arith.constant 0 : index
    %20 = vector.load %arg6[%c0_16, %c0_17] : memref<8x1xf32, #tpu.memory_space<vmem>>, vector<8x1xf32>
    tpu.vector_store %arg6[%c0_16, %c0_17], %19 {strides = array<i32>} : memref<8x1xf32, #tpu.memory_space<vmem>>, vector<8x1xf32>,
    %c0_i32_18 = arith.constant 0 : i32
    %21 = arith.cmpi eq, %arg0, %c0_i32_18 : i32
    %22 = arith.extui %21 : i1 to i32
    %c0_i32_19 = arith.constant 0 : i32
    %23 = arith.cmpi ne, %22, %c0_i32_19 : i32
    scf.if %23 {
      %c0_20 = arith.constant 0 : index
      %c0_21 = arith.constant 0 : index
      %24 = vector.load %arg5[%c0_20, %c0_21] : memref<8x1xf32, #tpu.memory_space<vmem>>, vector<8x1xf32>
      %25 = math.sqrt %24 : vector<8x1xf32>
      %cst_22 = arith.constant 9.99999993E-9 : f32
      %26 = vector.broadcast %cst_22 : f32 to vector<8x1xf32>
      %27 = arith.addf %25, %26 : vector<8x1xf32>
      %cst_23 = arith.constant 1.000000e+00 : f32
      %28 = vector.broadcast %cst_23 : f32 to vector<8x1xf32>
      %29 = arith.divf %28, %27 : vector<8x1xf32>
      %c0_24 = arith.constant 0 : index
      %c0_25 = arith.constant 0 : index
      %30 = vector.load %arg6[%c0_24, %c0_25] : memref<8x1xf32, #tpu.memory_space<vmem>>, vector<8x1xf32>
      %31 = math.sqrt %30 : vector<8x1xf32>
      %cst_26 = arith.constant 9.99999993E-9 : f32
      %32 = vector.broadcast %cst_26 : f32 to vector<8x1xf32>
      %33 = arith.addf %31, %32 : vector<8x1xf32>
      %cst_27 = arith.constant 1.000000e+00 : f32
      %34 = vector.broadcast %cst_27 : f32 to vector<8x1xf32>
      %35 = arith.divf %34, %33 : vector<8x1xf32>
      %36 = tpu.iota {dimensions = array<i32: 0>} : vector<8x8xi32>
      %37 = tpu.iota {dimensions = array<i32: 1>} : vector<8x8xi32>
      %38 = arith.cmpi eq, %36, %37 : vector<8x8xi32>
      %cst_28 = arith.constant 0.000000e+00 : f32
      %39 = vector.shape_cast %35 : vector<8x1xf32> to vector<8x1xf32>
      %40 = vector.broadcast %39 : vector<8x1xf32> to vector<8x8xf32>
      %41 = vector.broadcast %cst_28 : f32 to vector<8x8xf32>
      %42 = arith.select %38, %40, %41 : vector<8x8xi1>, vector<8x8xf32>
      %c0_29 = arith.constant 0 : index
      %c0_30 = arith.constant 0 : index
      %43 = vector.load %arg4[%c0_29, %c0_30] : memref<8x8xf32, #tpu.memory_space<vmem>>, vector<8x8xf32>
      %44 = vector.broadcast %29 : vector<8x1xf32> to vector<8x8xf32>
      %45 = arith.mulf %43, %44 : vector<8x8xf32>
      %cst_31 = arith.constant dense<0.000000e+00> : vector<8x8xf32>
      %46 = tpu.matmul %45, %42, %cst_31 {dimension_numbers = #tpu.dot_dimension_numbers<[1], [0], [0], [1], [0, 0, 1, 1], [], []>} : vector<8x8xf32>, vector<8x8xf32>, vector<8x8xf32> -> vector<8x8xf32>
      %cst_32 = arith.constant dense<0.000000e+00> : vector<8x8xf32>
      %47 = tpu.matmul %46, %46, %cst_32 {dimension_numbers = #tpu.dot_dimension_numbers<[1], [1], [0], [0], [0, 0, 1, 0], [], []>} : vector<8x8xf32>, vector<8x8xf32>, vector<8x8xf32> -> vector<8x8xf32>
      %cst_33 = arith.constant 1.000000e+00 : f32
      %48 = vector.broadcast %cst_33 : f32 to vector<8x8xf32>
      %49 = arith.subf %47, %48 : vector<8x8xf32>
      %50 = arith.select %38, %49, %47 : vector<8x8xi1>, vector<8x8xf32>
      %cst_34 = arith.constant 2.000000e-01 : f32
      %51 = vector.broadcast %cst_34 : f32 to vector<8x8xf32>
      %52 = arith.cmpf ogt, %50, %51 : vector<8x8xf32>
      %cst_35 = arith.constant 0.959999978 : f32
      %53 = vector.broadcast %cst_35 : f32 to vector<8x8xf32>
      %54 = arith.cmpf olt, %50, %53 : vector<8x8xf32>
      %55 = arith.andi %52, %54 : vector<8x8xi1>
      %cst_36 = arith.constant 0.000000e+00 : f32
      %56 = vector.broadcast %cst_36 : f32 to vector<8x8xf32>
      %57 = arith.select %55, %50, %56 : vector<8x8xi1>, vector<8x8xf32>
      %cst_37 = arith.constant dense<0.000000e+00> : vector<8xf32>
      %58 = vector.multi_reduction <add>, %57, %cst_37 [1] : vector<8x8xf32> to vector<8xf32>
      %59 = vector.shape_cast %58 : vector<8xf32> to vector<8x1xf32>
      %60 = vector.shape_cast %59 : vector<8x1xf32> to vector<1x8x1xf32>
      %cst_38 = arith.constant dense<0.000000e+00> : vector<1xf32>
      %61 = vector.multi_reduction <add>, %60, %cst_38 [1, 2] : vector<1x8x1xf32> to vector<1xf32>
      %62 = vector.shape_cast %61 : vector<1xf32> to vector<1x1x1xf32>
      %63 = vector.extract %62[0, 0, 0] : f32 from vector<1x1x1xf32>
      %cst_39 = arith.constant 1.000000e+00 : f32
      %64 = arith.mulf %cst_39, %63 : f32
      %cst_40 = arith.constant 8.000000e+00 : f32
      %65 = arith.divf %64, %cst_40 : f32
      %c0_41 = arith.constant 0 : index
      %c0_42 = arith.constant 0 : index
      %66 = memref.load %arg3[%c0_41, %c0_42] : memref<1x1xf32, #tpu.memory_space<smem>>
      memref.store %65, %arg3[%c0_41, %c0_42] : memref<1x1xf32, #tpu.memory_space<smem>>
    } else {
    }
    return
  }
  func.func @transform_0(%arg0: i32) -> (i32, i32) {
    %c0_i32 = arith.constant 0 : i32
    %c0_i32_0 = arith.constant 0 : i32
    return %c0_i32, %arg0 : i32, i32
  }
  func.func @transform_1(%arg0: i32) -> (i32, i32) {
    %c0_i32 = arith.constant 0 : i32
    %c0_i32_0 = arith.constant 0 : i32
    return %c0_i32, %arg0 : i32, i32
  }
  func.func @transform_2(%arg0: i32) -> (i32, i32) {
    %c0_i32 = arith.constant 0 : i32
    %c0_i32_0 = arith.constant 0 : i32
    %c0_i32_1 = arith.constant 0 : i32
    return %c0_i32, %c0_i32_0 : i32, i32
  }
}

</mosaic_0001>

<llo_original>
// kernel: tpu_custom_call.1
$region0: #{tpu_custom_call.1}
  #allocation0 [shape = 'u32[]', space=smem, size = 0x4, offset = 0x4, fixed_abs, tag = 'smem constant byte address 0x4 - core index']
  #allocation1 [shape = 'u32[144,128]{1,0:T(1,128)}', space=vmem, size = 0x12000, scoped, tag = 'internal scratch']
  #allocation2 [shape = 'f32[8,8]{1,0:T(8,128)}', space=vmem, size = 0x1000, scoped, tag = 'scratch operand']
  #allocation3 [shape = 'f32[8,1]{1,0:T(8,128)}', space=vmem, size = 0x1000, scoped, tag = 'scratch operand']
  #allocation4 [shape = 'f32[8,1]{1,0:T(8,128)}', space=vmem, size = 0x1000, scoped, tag = 'scratch operand']
  %s0 = inlined_call_operand.hbm [shape: f32[8,32], index: 0, kind: input, shape index: {}]
  %s1 = inlined_call_operand.hbm [shape: f32[8,32], index: 1, kind: input, shape index: {}]
  %s2 = inlined_call_operand.hbm [shape: f32[1,1], index: 2, kind: output, shape index: {}]
  %s3 = sld [smem:[#allocation0]]
  $region34: #{tpu_custom_call.1} parent=0
    _
  %s5 = ssub.s32 1, %s3
  %s6 = scalar_select 0, %s5, %s3
  $region1: #{tpu_custom_call.1} parent=0
    #allocation5 [shape = 'u8[4096]{0}', space=vmem, size = 0x1000, scoped, tag = 'input window, operand 0, single buffered']
    #allocation6 [shape = 's32[1]{0}', space=sflag, size = 0x4, scoped, tag = 'scoped memory for tpu_custom_call.1']
    #allocation7 [shape = 's32[1]{0}', space=sflag, size = 0x4, scoped, tag = 'scoped memory for tpu_custom_call.1']
    #allocation8 [shape = 'u8[4096]{0}', space=vmem, size = 0x1000, scoped, tag = 'input window, operand 1, single buffered']
    #allocation9 [shape = 's32[1]{0}', space=sflag, size = 0x4, scoped, tag = 'scoped memory for tpu_custom_call.1']
    #allocation10 [shape = 'u8[512]{0}', space=smem, size = 0x200, scoped, tag = 'output window, operand 0, single buffered']
    %7 = vsyncpa [#allocation6], 0
    %8 = vsyncpa [#allocation9], 0
    %9 = vsyncpa [#allocation7], 0
    // Predicated region
    $region2: #{tpu_custom_call.1} parent=1 // pred_check
      _
    $region3: #{tpu_custom_call.1} parent=1 // pred_check_branch
      %11 = sbr.rel (0) target = $region5
    $region4: #{tpu_custom_call.1} parent=1 // pred_region
      %s13 = ssub.s32 128, 128
      %14 = vsyncadd [#allocation6], %s13
      %s16 = sshll.u32 [#allocation5], 4
      %s17 = int_to_ptr.vmem [resolvable:$true] %s16
      %19 = dma.hbm_to_vmem [thread:$0]  %s0, 128, %s17, [#allocation6]
    $region5: #{tpu_custom_call.1} parent=1 // pred_fallthru
      _
    // Predicated region
    $region6: #{tpu_custom_call.1} parent=1 // pred_check
      _
    $region7: #{tpu_custom_call.1} parent=1 // pred_check_branch
      %21 = sbr.rel (0) target = $region9
    $region8: #{tpu_custom_call.1} parent=1 // pred_region
      %s23 = ssub.s32 128, 128
      %24 = vsyncadd [#allocation9], %s23
      %s26 = sshll.u32 [#allocation8], 4
      %s27 = int_to_ptr.vmem [resolvable:$true] %s26
      %29 = dma.hbm_to_vmem [thread:$0]  %s1, 128, %s27, [#allocation9]
    $region9: #{tpu_custom_call.1} parent=1 // pred_fallthru
      _
    // Predicated region
    $region10: #{tpu_custom_call.1} parent=1 // pred_check
      _
    $region11: #{tpu_custom_call.1} parent=1 // pred_check_branch
      %31 = sbr.rel (0) target = $region13
    $region12: #{tpu_custom_call.1} parent=1 // pred_region
      %32 = dma.done [#allocation6], 128
    $region13: #{tpu_custom_call.1} parent=1 // pred_fallthru
      _
    // Predicated region
    $region14: #{tpu_custom_call.1} parent=1 // pred_check
      _
    $region15: #{tpu_custom_call.1} parent=1 // pred_check_branch
      %34 = sbr.rel (0) target = $region17
    $region16: #{tpu_custom_call.1} parent=1 // pred_region
      %35 = dma.done [#allocation9], 128
    $region17: #{tpu_custom_call.1} parent=1 // pred_fallthru
      _
    %p36 = scmp.eq.s32.totalorder 0, 0
    // Predicated region
    $region18: #{tpu_custom_call.1} parent=1 // pred_check
      %p37 = pneg %p36
    $region19: #{tpu_custom_call.1} parent=1 // pred_check_branch
      %39 = sbr.rel (%p37) target = $region21
    $region20: #{tpu_custom_call.1} parent=1 // pred_region
      %vm40 = vcmask 64512
      %41 = vst.msk [vmem:[#allocation2] sm:$0xff] %vm40, 0.0
      %vm42 = vcmask 7168
      %43 = vst.msk [vmem:[#allocation3] sm:$0xff] %vm42, 0.0
      %44 = vst.msk [vmem:[#allocation4] sm:$0xff] %vm42, 0.0
    $region21: #{tpu_custom_call.1} parent=1 // pred_fallthru
      _
    %v45 = vld [vmem:[#allocation5] sm:$0xff]
    %v46 = vld [vmem:[#allocation8] sm:$0xff]
    %v47 = vld [vmem:[#allocation2] sm:$0xff]
    %vm48 = vcmask 261120
    %v50 = vsel %vm48, %v45, 0
    %v53 = vsel %vm48, %v46, 0
    %55 = vmatprep.subr.mxu0 0.0
    %56 = vmatpush1.xpose.msra.mxu0 %v53
    %57 = vmatprep.subr.mxu0 0.0
    %58 = vmatpush1.xpose.msra.mxu0 0.0
    %59 = vmatprep.subr.mxu0 0.0
    %60 = vmatpush1.xpose.msra.mxu0 0.0
    %61 = vmatprep.subr.mxu0 0.0
    %62 = vmatpush1.xpose.msra.mxu0 0.0
    %63 = vmatprep.subr.mxu0 0.0
    %64 = vmatpush1.xpose.msra.mxu0 0.0
    %65 = vmatprep.subr.mxu0 0.0
    %66 = vmatpush1.xpose.msra.mxu0 0.0
    %67 = vmatprep.subr.mxu0 0.0
    %68 = vmatpush1.xpose.msra.mxu0 0.0
    %69 = vmatprep.subr.mxu0 0.0
    %70 = vmatpush1.xpose.msra.mxu0 0.0
    %71 = vmatprep.subr.mxu0 0.0
    %72 = vmatpush1.xpose.msra.mxu0 0.0
    %73 = vmatprep.subr.mxu0 0.0
    %74 = vmatpush1.xpose.msra.mxu0 0.0
    %75 = vmatprep.subr.mxu0 0.0
    %76 = vmatpush1.xpose.msra.mxu0 0.0
    %77 = vmatprep.subr.mxu0 0.0
    %78 = vmatpush1.xpose.msra.mxu0 0.0
    %79 = vmatprep.subr.mxu0 0.0
    %80 = vmatpush1.xpose.msra.mxu0 0.0
    %81 = vmatprep.subr.mxu0 0.0
    %82 = vmatpush1.xpose.msra.mxu0 0.0
    %83 = vmatprep.subr.mxu0 0.0
    %84 = vmatpush1.xpose.msra.mxu0 0.0
    %85 = vmatprep.subr.mxu0 0.0
    %86 = vmatpush1.xpose.msra.mxu0 0.0
    %87 = vmatprep.subr.mxu0 0.0
    %88 = vmatpush1.xpose.msra.mxu0 0.0
    %89 = vmatprep.subr.mxu0 0.0
    %90 = vmatpush1.xpose.msra.mxu0 0.0
    %91 = vmatprep.subr.mxu0 0.0
    %92 = vmatpush1.xpose.msra.mxu0 0.0
    %93 = vmatprep.subr.mxu0 0.0
    %94 = vmatpush1.xpose.msra.mxu0 0.0
    %95 = vmatprep.subr.mxu0 0.0
    %96 = vmatpush1.xpose.msra.mxu0 0.0
    %97 = vmatprep.subr.mxu0 0.0
    %98 = vmatpush1.xpose.msra.mxu0 0.0
    %99 = vmatprep.subr.mxu0 0.0
    %100 = vmatpush1.xpose.msra.mxu0 0.0
    %101 = vmatprep.subr.mxu0 0.0
    %102 = vmatpush1.xpose.msra.mxu0 0.0
    %103 = vmatprep.subr.mxu0 0.0
    %104 = vmatpush1.xpose.msra.mxu0 0.0
    %105 = vmatprep.subr.mxu0 0.0
    %106 = vmatpush1.xpose.msra.mxu0 0.0
    %107 = vmatprep.subr.mxu0 0.0
    %108 = vmatpush1.xpose.msra.mxu0 0.0
    %109 = vmatprep.subr.mxu0 0.0
    %110 = vmatpush1.xpose.msra.mxu0 0.0
    %111 = vmatprep.subr.mxu0 0.0
    %112 = vmatpush1.xpose.msra.mxu0 0.0
    %113 = vmatprep.subr.mxu0 0.0
    %114 = vmatpush1.xpose.msra.mxu0 0.0
    %115 = vmatprep.subr.mxu0 0.0
    %116 = vmatpush1.xpose.msra.mxu0 0.0
    %117 = vmatprep.subr.mxu0 0.0
    %118 = vmatpush1.xpose.msra.mxu0 0.0
    %119 = vmatprep.mubr.f32.mxu0 0.0
    %120 = vmatmul.mubr.f32.gmra.mrb[0].mxu0 %v50
    %v121 = vpop.f32.mrb[0].mxu0
    %v122 = vadd.f32 0.0, %v121
    %v123 = vpop.f32.mrb[0].mxu0
    %124 = vdwg.mxu0
    %v125 = vadd.f32 %v47, %v122
    %vm126 = vcmask 64512
    %127 = vst.msk [vmem:[#allocation2] sm:$0xff] %vm126, %v125
    %v128 = vld [vmem:[#allocation3] sm:$0xff]
    %v129 = vmul.f32 %v45, %v45
    %v130 = vsel %vm48, %v129, 0.0
    %131 = vadd.xlane.f32.xlu0 %v130
    %v132 = vpop.xlane.xlu0 %131
    %v133 = vadd.f32 %v128, %v132
    %vm134 = vcmask 7168
    %135 = vst.msk [vmem:[#allocation3] sm:$0xff] %vm134, %v133
    %v136 = vld [vmem:[#allocation4] sm:$0xff]
    %v137 = vmul.f32 %v46, %v46
    %v138 = vsel %vm48, %v137, 0.0
    %139 = vadd.xlane.f32.xlu0 %v138
    %v140 = vpop.xlane.xlu0 %139
    %v141 = vadd.f32 %v136, %v140
    %142 = vst.msk [vmem:[#allocation4] sm:$0xff] %vm134, %v141
    // Predicated region
    $region22: #{tpu_custom_call.1} parent=1 // pred_check
      %p143 = pneg %p36
    $region23: #{tpu_custom_call.1} parent=1 // pred_check_branch
      %145 = sbr.rel (%p143) target = $region25
    $region24: #{tpu_custom_call.1} parent=1 // pred_region
      %v146 = vld [vmem:[#allocation3] sm:$0xff]
      %v147 = vrsqrt.pop %v146
      %v148 = vmul.f32 %v146, %v147
      %vm149 = vcmp.eq.f32.partialorder %v146, inf
      %v150 = vsel %vm149, %v146, %v148
      %vm151 = vcmp.eq.f32.partialorder %v146, 0.0
      %v152 = vand.u32 %v146, 2147483648
      %v153 = vsel %vm151, %v152, %v150
      %v154 = vadd.f32 %v153, 1e-08
      %v155 = vrcp.pop %v154
      %v156 = vmul.f32 1.0, %v155
      %v157 = vld [vmem:[#allocation4] sm:$0xff]
      %v158 = vrsqrt.pop %v157
      %v159 = vmul.f32 %v157, %v158
      %vm160 = vcmp.eq.f32.partialorder %v157, inf
      %v161 = vsel %vm160, %v157, %v159
      %vm162 = vcmp.eq.f32.partialorder %v157, 0.0
      %v163 = vand.u32 %v157, 2147483648
      %v164 = vsel %vm162, %v163, %v161
      %v165 = vadd.f32 %v164, 1e-08
      %v166 = vrcp.pop %v165
      %v167 = vmul.f32 1.0, %v166
      %v168 = vlaneseq
      %v169 = vshrl.u32 %v168, 7
      %v170 = vlaneseq
      %v171 = vand.u32 %v170, 127
      %vm172 = vcmp.eq.s32.totalorder %v169, %v171
      %174 = vset.pattern.permute.xlu0 0
      %175 = vperm.xlu0 %174, %v167
      %v176 = vpop.permute.xlu0 %175
      %v178 = vsel %vm172, %v176, 0.0
      %v179 = vld [vmem:[#allocation2] sm:$0xff]
      %181 = vset.pattern.permute.xlu0 0
      %182 = vperm.xlu0 %181, %v156
      %v183 = vpop.permute.xlu0 %182
      %v185 = vmul.f32 %v179, %v183
      %v187 = vsel %vm126, %v185, 0
      %189 = vmatprep.subr.mxu0 0.0
      %190 = vmatpush1.msra.mxu0 %v178
      %191 = vmatprep.subr.mxu0 0.0
      %192 = vmatpush1.msra.mxu0 0.0
      %193 = vmatprep.subr.mxu0 0.0
      %194 = vmatpush1.msra.mxu0 0.0
      %195 = vmatprep.subr.mxu0 0.0
      %196 = vmatpush1.msra.mxu0 0.0
      %197 = vmatprep.subr.mxu0 0.0
      %198 = vmatpush1.msra.mxu0 0.0
      %199 = vmatprep.subr.mxu0 0.0
      %200 = vmatpush1.msra.mxu0 0.0
      %201 = vmatprep.subr.mxu0 0.0
      %202 = vmatpush1.msra.mxu0 0.0
      %203 = vmatprep.subr.mxu0 0.0
      %204 = vmatpush1.msra.mxu0 0.0
      %205 = vmatprep.subr.mxu0 0.0
      %206 = vmatpush1.msra.mxu0 0.0
      %207 = vmatprep.subr.mxu0 0.0
      %208 = vmatpush1.msra.mxu0 0.0
      %209 = vmatprep.subr.mxu0 0.0
      %210 = vmatpush1.msra.mxu0 0.0
      %211 = vmatprep.subr.mxu0 0.0
      %212 = vmatpush1.msra.mxu0 0.0
      %213 = vmatprep.subr.mxu0 0.0
      %214 = vmatpush1.msra.mxu0 0.0
      %215 = vmatprep.subr.mxu0 0.0
      %216 = vmatpush1.msra.mxu0 0.0
      %217 = vmatprep.subr.mxu0 0.0
      %218 = vmatpush1.msra.mxu0 0.0
      %219 = vmatprep.subr.mxu0 0.0
      %220 = vmatpush1.msra.mxu0 0.0
      %221 = vmatprep.subr.mxu0 0.0
      %222 = vmatpush1.msra.mxu0 0.0
      %223 = vmatprep.subr.mxu0 0.0
      %224 = vmatpush1.msra.mxu0 0.0
      %225 = vmatprep.subr.mxu0 0.0
      %226 = vmatpush1.msra.mxu0 0.0
      %227 = vmatprep.subr.mxu0 0.0
      %228 = vmatpush1.msra.mxu0 0.0
      %229 = vmatprep.subr.mxu0 0.0
      %230 = vmatpush1.msra.mxu0 0.0
      %231 = vmatprep.subr.mxu0 0.0
      %232 = vmatpush1.msra.mxu0 0.0
      %233 = vmatprep.subr.mxu0 0.0
      %234 = vmatpush1.msra.mxu0 0.0
      %235 = vmatprep.subr.mxu0 0.0
      %236 = vmatpush1.msra.mxu0 0.0
      %237 = vmatprep.subr.mxu0 0.0
      %238 = vmatpush1.msra.mxu0 0.0
      %239 = vmatprep.subr.mxu0 0.0
      %240 = vmatpush1.msra.mxu0 0.0
      %241 = vmatprep.subr.mxu0 0.0
      %242 = vmatpush1.msra.mxu0 0.0
      %243 = vmatprep.subr.mxu0 0.0
      %244 = vmatpush1.msra.mxu0 0.0
      %245 = vmatprep.subr.mxu0 0.0
      %246 = vmatpush1.msra.mxu0 0.0
      %247 = vmatprep.subr.mxu0 0.0
      %248 = vmatpush1.msra.mxu0 0.0
      %249 = vmatprep.subr.mxu0 0.0
      %250 = vmatpush1.msra.mxu0 0.0
      %251 = vmatprep.subr.mxu0 0.0
      %252 = vmatpush1.msra.mxu0 0.0
      %253 = vmatprep.mubr.f32.mxu0 0.0
      %254 = vmatmul.mubr.f32.gmra.mrb[0].mxu0 %v187
      %v255 = vpop.f32.mrb[0].mxu0
      %v256 = vadd.f32 0.0, %v255
      %v257 = vpop.f32.mrb[0].mxu0
      %258 = vdwg.mxu0
      %v260 = vsel %vm126, %v256, 0
      %262 = vmatprep.subr.mxu0 0.0
      %263 = vmatpush1.xpose.msra.mxu0 %v260
      %264 = vmatprep.subr.mxu0 0.0
      %265 = vmatpush1.xpose.msra.mxu0 0.0
      %266 = vmatprep.subr.mxu0 0.0
      %267 = vmatpush1.xpose.msra.mxu0 0.0
      %268 = vmatprep.subr.mxu0 0.0
      %269 = vmatpush1.xpose.msra.mxu0 0.0
      %270 = vmatprep.subr.mxu0 0.0
      %271 = vmatpush1.xpose.msra.mxu0 0.0
      %272 = vmatprep.subr.mxu0 0.0
      %273 = vmatpush1.xpose.msra.mxu0 0.0
      %274 = vmatprep.subr.mxu0 0.0
      %275 = vmatpush1.xpose.msra.mxu0 0.0
      %276 = vmatprep.subr.mxu0 0.0
      %277 = vmatpush1.xpose.msra.mxu0 0.0
      %278 = vmatprep.subr.mxu0 0.0
      %279 = vmatpush1.xpose.msra.mxu0 0.0
      %280 = vmatprep.subr.mxu0 0.0
      %281 = vmatpush1.xpose.msra.mxu0 0.0
      %282 = vmatprep.subr.mxu0 0.0
      %283 = vmatpush1.xpose.msra.mxu0 0.0
      %284 = vmatprep.subr.mxu0 0.0
      %285 = vmatpush1.xpose.msra.mxu0 0.0
      %286 = vmatprep.subr.mxu0 0.0
      %287 = vmatpush1.xpose.msra.mxu0 0.0
      %288 = vmatprep.subr.mxu0 0.0
      %289 = vmatpush1.xpose.msra.mxu0 0.0
      %290 = vmatprep.subr.mxu0 0.0
      %291 = vmatpush1.xpose.msra.mxu0 0.0
      %292 = vmatprep.subr.mxu0 0.0
      %293 = vmatpush1.xpose.msra.mxu0 0.0
      %294 = vmatprep.subr.mxu0 0.0
      %295 = vmatpush1.xpose.msra.mxu0 0.0
      %296 = vmatprep.subr.mxu0 0.0
      %297 = vmatpush1.xpose.msra.mxu0 0.0
      %298 = vmatprep.subr.mxu0 0.0
      %299 = vmatpush1.xpose.msra.mxu0 0.0
      %300 = vmatprep.subr.mxu0 0.0
      %301 = vmatpush1.xpose.msra.mxu0 0.0
      %302 = vmatprep.subr.mxu0 0.0
      %303 = vmatpush1.xpose.msra.mxu0 0.0
      %304 = vmatprep.subr.mxu0 0.0
      %305 = vmatpush1.xpose.msra.mxu0 0.0
      %306 = vmatprep.subr.mxu0 0.0
      %307 = vmatpush1.xpose.msra.mxu0 0.0
      %308 = vmatprep.subr.mxu0 0.0
      %309 = vmatpush1.xpose.msra.mxu0 0.0
      %310 = vmatprep.subr.mxu0 0.0
      %311 = vmatpush1.xpose.msra.mxu0 0.0
      %312 = vmatprep.subr.mxu0 0.0
      %313 = vmatpush1.xpose.msra.mxu0 0.0
      %314 = vmatprep.subr.mxu0 0.0
      %315 = vmatpush1.xpose.msra.mxu0 0.0
      %316 = vmatprep.subr.mxu0 0.0
      %317 = vmatpush1.xpose.msra.mxu0 0.0
      %318 = vmatprep.subr.mxu0 0.0
      %319 = vmatpush1.xpose.msra.mxu0 0.0
      %320 = vmatprep.subr.mxu0 0.0
      %321 = vmatpush1.xpose.msra.mxu0 0.0
      %322 = vmatprep.subr.mxu0 0.0
      %323 = vmatpush1.xpose.msra.mxu0 0.0
      %324 = vmatprep.subr.mxu0 0.0
      %325 = vmatpush1.xpose.msra.mxu0 0.0
      %326 = vmatprep.mubr.f32.mxu0 0.0
      %327 = vmatmul.mubr.f32.gmra.mrb[0].mxu0 %v260
      %v328 = vpop.f32.mrb[0].mxu0
      %v329 = vadd.f32 0.0, %v328
      %v330 = vpop.f32.mrb[0].mxu0
      %331 = vdwg.mxu0
      %v332 = vsub.f32 %v329, 1.0
      %v333 = vsel %vm172, %v332, %v329
      %vm334 = vcmp.gt.f32.partialorder %v333, 0.2
      %vm335 = vcmp.lt.f32.partialorder %v333, 0.96
      %vm336 = vmand %vm334, %vm335
      %v337 = vsel %vm336, %v333, 0.0
      %v338 = vsel %vm126, %v337, 0.0
      %339 = vadd.xlane.f32.xlu0 %v338
      %v340 = vpop.xlane.xlu0 %339
      %v341 = vsel %vm134, %v340, 0.0
      %342 = vadd.xlane.f32.xlu0 %v341
      %v343 = vpop.xlane.xlu0 %342
      %v344 = vrot.slane %v343, 4
      %v345 = vadd.f32 %v343, %v344
      %v346 = vrot.slane %v345, 2
      %v347 = vadd.f32 %v345, %v346
      %v348 = vrot.slane %v347, 1
      %v349 = vadd.f32 %v347, %v348
      %s350 = vtos %v349
      %v351 = vrcp.pop 8.0
      %s352 = vtos %v351
      %s353 = smul.f32 %s350, %s352
      %s354 = scalar_lea.smem [#allocation10], 0
      %355 = sst [smem:[%s354]] %s353
    $region25: #{tpu_custom_call.1} parent=1 // pred_fallthru
      _
    // Predicated region
    $region26: #{tpu_custom_call.1} parent=1 // pred_check
      _
    $region27: #{tpu_custom_call.1} parent=1 // pred_check_branch
      %357 = sbr.rel (0) target = $region29
    $region28: #{tpu_custom_call.1} parent=1 // pred_region
      %s359 = ssub.s32 16, 16
      %360 = vsyncadd [#allocation7], %s359
      %363 = dma.smem_to_hbm [#allocation10], 16, %s2, [#allocation7]
    $region29: #{tpu_custom_call.1} parent=1 // pred_fallthru
      _
    // Predicated region
    $region30: #{tpu_custom_call.1} parent=1 // pred_check
      _
    $region31: #{tpu_custom_call.1} parent=1 // pred_check_branch
      %365 = sbr.rel (0) target = $region33
    $region32: #{tpu_custom_call.1} parent=1 // pred_region
      %366 = dma.done [#allocation7], 16
    $region33: #{tpu_custom_call.1} parent=1 // pred_fallthru
      _
    %367 = sfence
    %368 = vsyncpa [#allocation6], 1
    %369 = vsyncpa [#allocation9], 1
    %370 = vsyncpa [#allocation7], 1

</llo_original>
